<compile_context>
chip_gen: v5e
topology: v5e:2x2
jax: 0.10.0
libtpu: 0.0.40
codegen_flags: <defaults>
</compile_context>

<pallas_src>
import functools

import jax
import jax.numpy as jnp
from jax.experimental import pallas as pl
from jax.experimental.pallas import tpu as pltpu


def _add_const_kernel(x_ref, o_ref, *, b):
    # b is a compile-time Python scalar -> folds into the single VPU add.
    o_ref[...] = x_ref[...] + b


def _mod_forward_impl(x: jax.Array, b: int) -> jax.Array:
    """Equivalent of Mod.forward: wait(fork(AddMod, a=x, b=2)) == x + b."""
    orig_shape = x.shape
    total = x.size
    itemsize = jnp.dtype(x.dtype).itemsize

    # Widest lane dim that divides the element count exactly -> long unmasked
    # vst runs and no pad/slice copies for the common case.
    lanes = next((w for w in (1024, 512, 256, 128) if total % w == 0), None)
    if lanes is None:
        # TODO(synk): handle ragged tails with an in-kernel masked store
        # instead of a pad copy (rare path; not hit by this module's shapes).
        lanes = 128
        padded = pl.cdiv(total, lanes) * lanes
        flat = jnp.pad(x.reshape(-1), (0, padded - total))
    else:
        padded = total
        flat = x.reshape(-1)

    rows = padded // lanes
    slab = flat.reshape(rows, lanes)

    # Sublane multiple for the block row dim (f32: 8, bf16: 16, int8: 32).
    sub = {4: 8, 2: 16, 1: 32}.get(itemsize, 8)
    # ~2 MiB blocks: (in + out) x double-buffering stays well under v7x's
    # 32 MiB default scoped VMEM limit while amortizing per-step overhead.
    target_rows = max(sub, ((2 * 1024 * 1024) // (lanes * itemsize)) // sub * sub)

    kernel = functools.partial(_add_const_kernel, b=b)

    if rows > target_rows:
        br = target_rows
        out_slab = pl.pallas_call(
            kernel,
            out_shape=jax.ShapeDtypeStruct(slab.shape, x.dtype),
            grid=(pl.cdiv(rows, br),),
            in_specs=[pl.BlockSpec((br, lanes), lambda i: (i, 0))],
            out_specs=pl.BlockSpec((br, lanes), lambda i: (i, 0)),
            compiler_params=pltpu.CompilerParams(
                dimension_semantics=("parallel",)
            ),
        )(slab)
    else:
        # Tiny input (this module's case): one full-array block, no grid.
        out_slab = pl.pallas_call(
            kernel,
            out_shape=jax.ShapeDtypeStruct(slab.shape, x.dtype),
            in_specs=[pl.BlockSpec(slab.shape, lambda: (0, 0))],
            out_specs=pl.BlockSpec(slab.shape, lambda: (0, 0)),
        )(slab)

    out = out_slab.reshape(-1)
    if padded != total:
        out = out[:total]
    return out.reshape(orig_shape)


# jit with b static: reshapes become bitcasts, one custom call per invocation.
mod_forward = jax.jit(_mod_forward_impl, static_argnums=(1,))


if __name__ == "__main__":
    key = jax.random.PRNGKey(0)
    # Small NCHW input consistent with an arbitrary tensor `a`.
    x = jax.random.normal(key, (2, 4, 16, 16), dtype=jnp.float32)

    out = mod_forward(x, 2)
    jax.block_until_ready(out)

    # Correctness check against the trivial reference (x + 2).
    assert out.shape == x.shape and out.dtype == x.dtype
    assert jnp.allclose(out, x + 2.0)

    print("KERNEL_OK")
</pallas_src>

<mosaic_0001>
module attributes {stable_mosaic.version = 11 : i64} {
  func.func @_add_const_kernel(%arg0: memref<2x1024xf32, #tpu.memory_space<vmem>>, %arg1: memref<2x1024xf32, #tpu.memory_space<vmem>>) attributes {dimension_semantics = [], scalar_prefetch = 0 : i64, scratch_operands = 0 : i64, tpu.core_type = #tpu.core_type<tc>} {
    %c0 = arith.constant 0 : index
    %c0_0 = arith.constant 0 : index
    %0 = vector.load %arg0[%c0, %c0_0] : memref<2x1024xf32, #tpu.memory_space<vmem>>, vector<2x1024xf32>
    %cst = arith.constant 2.000000e+00 : f32
    %1 = vector.broadcast %cst : f32 to vector<2x1024xf32>
    %2 = arith.addf %0, %1 : vector<2x1024xf32>
    %c0_1 = arith.constant 0 : index
    %c0_2 = arith.constant 0 : index
    %3 = vector.load %arg1[%c0_1, %c0_2] : memref<2x1024xf32, #tpu.memory_space<vmem>>, vector<2x1024xf32>
    tpu.vector_store %arg1[%c0_1, %c0_2], %2 {strides = array<i32>} : memref<2x1024xf32, #tpu.memory_space<vmem>>, vector<2x1024xf32>,
    return
  }
}

</mosaic_0001>

<llo_original>
// kernel: _mod_forward_impl.1
$region0: #{_mod_forward_impl.1}
  #allocation0 [shape = 'u32[]', space=smem, size = 0x4, offset = 0x4, fixed_abs, tag = 'smem constant byte address 0x4 - core index']
  #allocation1 [shape = 'u32[72,128]{1,0:T(1,128)}', space=vmem, size = 0x9000, scoped, tag = 'internal scratch']
  %s0 = inlined_call_operand.vmem [shape: f32[2,1024], index: 0, kind: input, shape index: {}]
  %s1 = inlined_call_operand.vmem [shape: f32[2,1024], index: 1, kind: output, shape index: {}]
  %s2 = sld [smem:[#allocation0]]
  $region14: #{_mod_forward_impl.1} parent=0
    _
  %s4 = ssub.s32 1, %s2
  %s5 = scalar_select 0, %s4, %s2
  // Predicated region
  $region2: #{_mod_forward_impl.1} parent=0 // pred_check
    _
  $region3: #{_mod_forward_impl.1} parent=0 // pred_check_branch
    %7 = sbr.rel (0) target = $region5
  $region4: #{_mod_forward_impl.1} parent=0 // pred_region
    _
  $region5: #{_mod_forward_impl.1} parent=0 // pred_fallthru
    _
  %v8 = vld [vmem:[%s0] sm:$0xff]
  %v9 = vld [vmem:[%s0 + $0x8] sm:$0xff]
  %v10 = vadd.f32 %v8, 2.0
  %v11 = vadd.f32 %v9, 2.0
  %12 = vst [vmem:[%s1] sm:$0xff] %v10
  %13 = vst [vmem:[%s1 + $0x8] sm:$0xff] %v11
  // Predicated region
  $region6: #{_mod_forward_impl.1} parent=0 // pred_check
    _
  $region7: #{_mod_forward_impl.1} parent=0 // pred_check_branch
    %15 = sbr.rel (0) target = $region9
  $region8: #{_mod_forward_impl.1} parent=0 // pred_region
    _
  $region9: #{_mod_forward_impl.1} parent=0 // pred_fallthru
    _
  // Predicated region
  $region10: #{_mod_forward_impl.1} parent=0 // pred_check
    _
  $region11: #{_mod_forward_impl.1} parent=0 // pred_check_branch
    %17 = sbr.rel (0) target = $region13
  $region12: #{_mod_forward_impl.1} parent=0 // pred_region
    _
  $region13: #{_mod_forward_impl.1} parent=0 // pred_fallthru
    _

</llo_original>
